<compile_context>
chip_gen: v6e
topology: v6e:2x2x1
jax: 0.10.0
libtpu: 0.0.40
codegen_flags: <defaults>
</compile_context>

<pallas_src>
import functools

import jax
import jax.numpy as jnp
from jax.experimental import pallas as pl
from jax.experimental.pallas import tpu as pltpu


# ---------------------------------------------------------------------------
# Pallas kernels
# ---------------------------------------------------------------------------
def _conv_bn_kernel(x_ref, w_ref, b_ref, o_ref, acc_ref, *, relu):
    """out = [relu](patches @ W + b), K-tiled with f32 accumulator."""
    kk = pl.program_id(1)

    @pl.when(kk == 0)
    def _():
        acc_ref[...] = jnp.zeros_like(acc_ref)

    acc_ref[...] += jnp.dot(x_ref[...], w_ref[...],
                            preferred_element_type=jnp.float32)

    @pl.when(kk == pl.num_programs(1) - 1)
    def _():
        out = acc_ref[...] + b_ref[...]
        if relu:
            out = jnp.maximum(out, 0.0)
        o_ref[...] = out.astype(o_ref.dtype)


def _conv_bn_shortcut_kernel(x_ref, w_ref, b_ref, xs_ref, ws_ref, bs_ref,
                             o_ref, acc_ref):
    """out = relu(patches @ W + b + xs @ Ws + bs)  (projection shortcut)."""
    kk = pl.program_id(1)

    @pl.when(kk == 0)
    def _():
        # 1x1x1 projection shortcut matmul + both biases; once per M tile.
        acc_ref[...] = (
            jnp.dot(xs_ref[...], ws_ref[...], preferred_element_type=jnp.float32)
            + b_ref[...] + bs_ref[...])

    acc_ref[...] += jnp.dot(x_ref[...], w_ref[...],
                            preferred_element_type=jnp.float32)

    @pl.when(kk == pl.num_programs(1) - 1)
    def _():
        o_ref[...] = jnp.maximum(acc_ref[...], 0.0).astype(o_ref.dtype)


def _conv_bn_resadd_kernel(x_ref, w_ref, b_ref, r_ref, o_ref, acc_ref):
    """out = relu(patches @ W + b + residual)  (identity shortcut)."""
    kk = pl.program_id(1)

    @pl.when(kk == 0)
    def _():
        acc_ref[...] = b_ref[...] + r_ref[...].astype(jnp.float32)

    acc_ref[...] += jnp.dot(x_ref[...], w_ref[...],
                            preferred_element_type=jnp.float32)

    @pl.when(kk == pl.num_programs(1) - 1)
    def _():
        o_ref[...] = jnp.maximum(acc_ref[...], 0.0).astype(o_ref.dtype)


# ---------------------------------------------------------------------------
# Wrappers: padding, tiling, pallas_call
# ---------------------------------------------------------------------------
_TM_MAX = 512        # M rows per tile (v5e/v6e/v7x friendly; lane-dense output)
_TK_MAX = 2048       # contraction tile (keeps weight tile small in VMEM)
_VMEM_LIMIT = 64 * 1024 * 1024


def _round_up(x, m):
    return ((x + m - 1) // m) * m


def _pad2(a, rows, cols):
    pr, pc = rows - a.shape[0], cols - a.shape[1]
    if pr or pc:
        a = jnp.pad(a, ((0, pr), (0, pc)))
    return a


def _tiles(m, k):
    tm = min(_TM_MAX, _round_up(m, 8))
    mp = _round_up(m, tm)
    kp0 = _round_up(k, 128)
    ksteps = max(1, -(-kp0 // _TK_MAX))
    tk = _round_up(-(-kp0 // ksteps), 128)
    return tm, mp, tk, ksteps * tk, ksteps


def _compiler_params():
    # M axis "parallel" (sharded across TensorCores on v7x megacore),
    # K reduction axis "arbitrary" (accumulator resident across it).
    return pltpu.CompilerParams(
        dimension_semantics=("parallel", "arbitrary"),
        vmem_limit_bytes=_VMEM_LIMIT,
    )


def conv_bn_act(patches, w_mat, bias, *, cout_p, relu, out_dtype=jnp.bfloat16):
    m, k = patches.shape
    tm, mp, tk, kp, ksteps = _tiles(m, k)

    x = _pad2(patches, mp, kp).astype(jnp.bfloat16)
    w = _pad2(w_mat, kp, cout_p).astype(jnp.bfloat16)
    b = _pad2(bias.reshape(1, -1), 1, cout_p).astype(jnp.float32)

    out = pl.pallas_call(
        functools.partial(_conv_bn_kernel, relu=relu),
        out_shape=jax.ShapeDtypeStruct((mp, cout_p), out_dtype),
        grid=(mp // tm, ksteps),
        in_specs=[
            pl.BlockSpec((tm, tk), lambda i, kk: (i, kk)),
            pl.BlockSpec((tk, cout_p), lambda i, kk: (kk, 0)),
            pl.BlockSpec((1, cout_p), lambda i, kk: (0, 0)),
        ],
        out_specs=pl.BlockSpec((tm, cout_p), lambda i, kk: (i, 0)),
        scratch_shapes=[pltpu.VMEM((tm, cout_p), jnp.float32)],
        compiler_params=_compiler_params(),
    )(x, w, b)
    return out[:m]


def conv_bn_shortcut_relu(patches, w_mat, bias, xs_rows, ws_mat, bs, *,
                          cout_p, out_dtype=jnp.float32):
    m, k = patches.shape
    cin = ws_mat.shape[0]
    cin_p = _round_up(cin, 128)
    tm, mp, tk, kp, ksteps = _tiles(m, k)

    x = _pad2(patches, mp, kp).astype(jnp.bfloat16)
    w = _pad2(w_mat, kp, cout_p).astype(jnp.bfloat16)
    b = _pad2(bias.reshape(1, -1), 1, cout_p).astype(jnp.float32)
    xs = _pad2(xs_rows, mp, cin_p).astype(jnp.bfloat16)
    ws = _pad2(ws_mat, cin_p, cout_p).astype(jnp.bfloat16)
    bsr = _pad2(bs.reshape(1, -1), 1, cout_p).astype(jnp.float32)

    out = pl.pallas_call(
        _conv_bn_shortcut_kernel,
        out_shape=jax.ShapeDtypeStruct((mp, cout_p), out_dtype),
        grid=(mp // tm, ksteps),
        in_specs=[
            pl.BlockSpec((tm, tk), lambda i, kk: (i, kk)),
            pl.BlockSpec((tk, cout_p), lambda i, kk: (kk, 0)),
            pl.BlockSpec((1, cout_p), lambda i, kk: (0, 0)),
            pl.BlockSpec((tm, cin_p), lambda i, kk: (i, 0)),
            pl.BlockSpec((cin_p, cout_p), lambda i, kk: (0, 0)),
            pl.BlockSpec((1, cout_p), lambda i, kk: (0, 0)),
        ],
        out_specs=pl.BlockSpec((tm, cout_p), lambda i, kk: (i, 0)),
        scratch_shapes=[pltpu.VMEM((tm, cout_p), jnp.float32)],
        compiler_params=_compiler_params(),
    )(x, w, b, xs, ws, bsr)
    return out[:m]


def conv_bn_resadd_relu(patches, w_mat, bias, res_rows, *, cout_p,
                        out_dtype=jnp.float32):
    m, k = patches.shape
    tm, mp, tk, kp, ksteps = _tiles(m, k)

    x = _pad2(patches, mp, kp).astype(jnp.bfloat16)
    w = _pad2(w_mat, kp, cout_p).astype(jnp.bfloat16)
    b = _pad2(bias.reshape(1, -1), 1, cout_p).astype(jnp.float32)
    r = _pad2(res_rows, mp, cout_p).astype(jnp.float32)

    out = pl.pallas_call(
        _conv_bn_resadd_kernel,
        out_shape=jax.ShapeDtypeStruct((mp, cout_p), out_dtype),
        grid=(mp // tm, ksteps),
        in_specs=[
            pl.BlockSpec((tm, tk), lambda i, kk: (i, kk)),
            pl.BlockSpec((tk, cout_p), lambda i, kk: (kk, 0)),
            pl.BlockSpec((1, cout_p), lambda i, kk: (0, 0)),
            pl.BlockSpec((tm, cout_p), lambda i, kk: (i, 0)),
        ],
        out_specs=pl.BlockSpec((tm, cout_p), lambda i, kk: (i, 0)),
        scratch_shapes=[pltpu.VMEM((tm, cout_p), jnp.float32)],
        compiler_params=_compiler_params(),
    )(x, w, b, r)
    return out[:m]


# ---------------------------------------------------------------------------
# Plain-JAX glue: patch extraction, BN folding, layout plumbing
# ---------------------------------------------------------------------------
def extract_patches(x_ncdhw, ksize, stride, pad):
    """NCDHW -> (N*Do*Ho*Wo, Cin*k^3) rows, feature order (c, kd, kh, kw)."""
    patches = jax.lax.conv_general_dilated_patches(
        x_ncdhw,
        filter_shape=(ksize, ksize, ksize),
        window_strides=(stride, stride, stride),
        padding=((pad, pad), (pad, pad), (pad, pad)),
        dimension_numbers=("NCDHW", "OIDHW", "NDHWC"),
    )
    n, do, ho, wo, kfeat = patches.shape
    return patches.reshape(n * do * ho * wo, kfeat), (do, ho, wo)


def fold_bn(w, b, gamma, beta, mean, var, eps=1e-5):
    """Fold eval-mode BatchNorm3d into conv weight/bias (per output channel)."""
    scale = gamma / jnp.sqrt(var + eps)
    w_eff = w * scale[:, None, None, None, None]
    b_eff = (b - mean) * scale + beta
    return w_eff, b_eff


def basic_block_forward(x_ncdhw, params, stride, eps=1e-5):
    n, cin, _, _, _ = x_ncdhw.shape
    cout = params["conv1_w"].shape[0]
    cout_p = _round_up(cout, 128)
    has_proj = (stride != 1) or (cout != cin)

    # conv1 (3x3x3, stride, pad=1) + bn1 + relu
    w1, b1 = fold_bn(params["conv1_w"], params["conv1_b"], params["bn1_gamma"],
                     params["bn1_beta"], params["bn1_mean"], params["bn1_var"], eps)
    patches1, (do, ho, wo) = extract_patches(x_ncdhw, 3, stride, 1)
    m = n * do * ho * wo
    out1 = conv_bn_act(patches1, w1.reshape(cout, -1).T, b1,
                       cout_p=cout_p, relu=True, out_dtype=jnp.bfloat16)

    # conv2 patches from the conv1 output volume (real channels only)
    out1_ncdhw = jnp.transpose(
        out1[:, :cout].reshape(n, do, ho, wo, cout), (0, 4, 1, 2, 3))
    patches2, _ = extract_patches(out1_ncdhw, 3, 1, 1)

    # conv2 (3x3x3, stride=1, pad=1) + bn2 + residual + relu, fused
    w2, b2 = fold_bn(params["conv2_w"], params["conv2_b"], params["bn2_gamma"],
                     params["bn2_beta"], params["bn2_mean"], params["bn2_var"], eps)
    w2_mat = w2.reshape(cout, -1).T

    if has_proj:
        ws, bs = fold_bn(params["sc_w"], params["sc_b"], params["scbn_gamma"],
                         params["scbn_beta"], params["scbn_mean"],
                         params["scbn_var"], eps)
        ws_mat = ws.reshape(cout, cin).T
        x_s = x_ncdhw[:, :, ::stride, ::stride, ::stride]
        xs_rows = jnp.transpose(x_s, (0, 2, 3, 4, 1)).reshape(m, cin)
        out2 = conv_bn_shortcut_relu(patches2, w2_mat, b2, xs_rows, ws_mat, bs,
                                     cout_p=cout_p, out_dtype=jnp.float32)
    else:
        res_rows = jnp.transpose(x_ncdhw, (0, 2, 3, 4, 1)).reshape(m, cin)
        out2 = conv_bn_resadd_relu(patches2, w2_mat, b2, res_rows,
                                   cout_p=cout_p, out_dtype=jnp.float32)

    out = out2[:, :cout].reshape(n, do, ho, wo, cout)
    return jnp.transpose(out, (0, 4, 1, 2, 3)).astype(x_ncdhw.dtype)


# ---------------------------------------------------------------------------
# Pure-JAX reference (f32) for correctness checking
# ---------------------------------------------------------------------------
def reference_forward(x, params, stride, eps=1e-5):
    def conv3d(inp, w, b, s, pad):
        out = jax.lax.conv_general_dilated(
            inp, w, window_strides=(s, s, s), padding=((pad, pad),) * 3,
            dimension_numbers=("NCDHW", "OIDHW", "NCDHW"),
            precision=jax.lax.Precision.HIGHEST)
        return out + b[None, :, None, None, None]

    def bn(inp, gamma, beta, mean, var):
        c = lambda v: v[None, :, None, None, None]
        return (inp - c(mean)) / jnp.sqrt(c(var) + eps) * c(gamma) + c(beta)

    cout, cin = params["conv1_w"].shape[0], x.shape[1]
    out = conv3d(x, params["conv1_w"], params["conv1_b"], stride, 1)
    out = jax.nn.relu(bn(out, params["bn1_gamma"], params["bn1_beta"],
                         params["bn1_mean"], params["bn1_var"]))
    out = conv3d(out, params["conv2_w"], params["conv2_b"], 1, 1)
    out = bn(out, params["bn2_gamma"], params["bn2_beta"],
             params["bn2_mean"], params["bn2_var"])
    if stride != 1 or cout != cin:
        res = conv3d(x, params["sc_w"], params["sc_b"], stride, 0)
        res = bn(res, params["scbn_gamma"], params["scbn_beta"],
                 params["scbn_mean"], params["scbn_var"])
    else:
        res = x
    return jax.nn.relu(out + res)


# ---------------------------------------------------------------------------
# Deterministic parameter construction (shapes from BasicBlock.__init__)
# ---------------------------------------------------------------------------
def make_params(key, n_in, n_out, stride):
    keys = jax.random.split(key, 12)
    p = {
        "conv1_w": 0.1 * jax.random.normal(keys[0], (n_out, n_in, 3, 3, 3), jnp.float32),
        "conv1_b": 0.1 * jax.random.normal(keys[1], (n_out,), jnp.float32),
        "bn1_gamma": 1.0 + 0.1 * jax.random.normal(keys[2], (n_out,), jnp.float32),
        "bn1_beta": 0.1 * jax.random.normal(keys[3], (n_out,), jnp.float32),
        "bn1_mean": 0.05 * jax.random.normal(keys[4], (n_out,), jnp.float32),
        "bn1_var": 1.0 + 0.1 * jnp.abs(jax.random.normal(keys[5], (n_out,), jnp.float32)),
        "conv2_w": 0.1 * jax.random.normal(keys[6], (n_out, n_out, 3, 3, 3), jnp.float32),
        "conv2_b": 0.1 * jax.random.normal(keys[7], (n_out,), jnp.float32),
        "bn2_gamma": 1.0 + 0.1 * jax.random.normal(keys[8], (n_out,), jnp.float32),
        "bn2_beta": 0.1 * jax.random.normal(keys[9], (n_out,), jnp.float32),
        "bn2_mean": 0.05 * jax.random.normal(keys[10], (n_out,), jnp.float32),
        "bn2_var": 1.0 + 0.1 * jnp.abs(jax.random.normal(keys[11], (n_out,), jnp.float32)),
    }
    if stride != 1 or n_out != n_in:
        sk = jax.random.split(jax.random.fold_in(key, 99), 6)
        p.update({
            "sc_w": 0.1 * jax.random.normal(sk[0], (n_out, n_in, 1, 1, 1), jnp.float32),
            "sc_b": 0.1 * jax.random.normal(sk[1], (n_out,), jnp.float32),
            "scbn_gamma": 1.0 + 0.1 * jax.random.normal(sk[2], (n_out,), jnp.float32),
            "scbn_beta": 0.1 * jax.random.normal(sk[3], (n_out,), jnp.float32),
            "scbn_mean": 0.05 * jax.random.normal(sk[4], (n_out,), jnp.float32),
            "scbn_var": 1.0 + 0.1 * jnp.abs(jax.random.normal(sk[5], (n_out,), jnp.float32)),
        })
    return p


if __name__ == "__main__":
    key = jax.random.PRNGKey(0)

    # Case 1: projection shortcut (stride=2, channel expansion), NCDHW input.
    n_in, n_out, stride = 4, 8, 2
    kx, kp = jax.random.split(key)
    x = jax.random.normal(kx, (2, n_in, 8, 8, 8), jnp.float32)
    params = make_params(kp, n_in, n_out, stride)
    fwd = jax.jit(functools.partial(basic_block_forward, stride=stride))
    out = jax.block_until_ready(fwd(x, params))
    assert out.shape == (2, n_out, 4, 4, 4), out.shape
    assert bool(jnp.all(out >= 0.0))
    ref = reference_forward(x, params, stride)
    assert bool(jnp.allclose(out, ref, atol=1e-1, rtol=1e-1)), \
        float(jnp.max(jnp.abs(out - ref)))

    # Case 2: identity shortcut (stride=1, n_in == n_out).
    n_in2 = n_out2 = 8
    kx2, kp2 = jax.random.split(jax.random.fold_in(key, 1))
    x2 = jax.random.normal(kx2, (2, n_in2, 8, 8, 8), jnp.float32)
    params2 = make_params(kp2, n_in2, n_out2, 1)
    fwd2 = jax.jit(functools.partial(basic_block_forward, stride=1))
    out2 = jax.block_until_ready(fwd2(x2, params2))
    assert out2.shape == (2, n_out2, 8, 8, 8), out2.shape
    ref2 = reference_forward(x2, params2, 1)
    assert bool(jnp.allclose(out2, ref2, atol=1e-1, rtol=1e-1)), \
        float(jnp.max(jnp.abs(out2 - ref2)))

    print("KERNEL_OK")
</pallas_src>

<mosaic_0001>
module attributes {stable_mosaic.version = 11 : i64} {
  func.func @_conv_bn_kernel(%arg0: i32, %arg1: i32, %arg2: memref<128x128xbf16, #tpu.memory_space<vmem>>, %arg3: memref<128x128xbf16, #tpu.memory_space<vmem>>, %arg4: memref<1x128xf32, #tpu.memory_space<vmem>>, %arg5: memref<128x128xbf16, #tpu.memory_space<vmem>>, %arg6: memref<128x128xf32, #tpu.memory_space<vmem>>) attributes {dimension_semantics = [#tpu.dimension_semantics<parallel>, #tpu.dimension_semantics<arbitrary>], iteration_bounds = array<i64: 1, 1>, scalar_prefetch = 0 : i64, scratch_operands = 1 : i64, tpu.core_type = #tpu.core_type<tc>, window_params = [{transform_indices = @transform_0, window_bounds = array<i64: 128, 128>}, {transform_indices = @transform_1, window_bounds = array<i64: 128, 128>}, {pipeline_mode = #tpu.pipeline_mode<synchronous>, transform_indices = @transform_2, window_bounds = array<i64: 1, 128>}, {transform_indices = @transform_3, window_bounds = array<i64: 128, 128>}]} {
    %c0_i32 = arith.constant 0 : i32
    %0 = arith.cmpi eq, %arg1, %c0_i32 : i32
    %1 = arith.extui %0 : i1 to i32
    %c0_i32_0 = arith.constant 0 : i32
    %2 = arith.cmpi ne, %1, %c0_i32_0 : i32
    scf.if %2 {
      %cst_10 = arith.constant 0.000000e+00 : f32
      %12 = vector.broadcast %cst_10 : f32 to vector<128x128xf32>
      %c0_11 = arith.constant 0 : index
      %c0_12 = arith.constant 0 : index
      %13 = vector.load %arg6[%c0_11, %c0_12] : memref<128x128xf32, #tpu.memory_space<vmem>>, vector<128x128xf32>
      tpu.vector_store %arg6[%c0_11, %c0_12], %12 {strides = array<i32>} : memref<128x128xf32, #tpu.memory_space<vmem>>, vector<128x128xf32>,
    } else {
    }
    %c0 = arith.constant 0 : index
    %c0_1 = arith.constant 0 : index
    %3 = vector.load %arg6[%c0, %c0_1] : memref<128x128xf32, #tpu.memory_space<vmem>>, vector<128x128xf32>
    %c0_2 = arith.constant 0 : index
    %c0_3 = arith.constant 0 : index
    %4 = vector.load %arg2[%c0_2, %c0_3] : memref<128x128xbf16, #tpu.memory_space<vmem>>, vector<128x128xbf16>
    %c0_4 = arith.constant 0 : index
    %c0_5 = arith.constant 0 : index
    %5 = vector.load %arg3[%c0_4, %c0_5] : memref<128x128xbf16, #tpu.memory_space<vmem>>, vector<128x128xbf16>
    %cst = arith.constant dense<0.000000e+00> : vector<128x128xf32>
    %6 = tpu.matmul %4, %5, %cst {dimension_numbers = #tpu.dot_dimension_numbers<[1], [0], [0], [1], [0, 0, 1, 1], [], []>} : vector<128x128xbf16>, vector<128x128xbf16>, vector<128x128xf32> -> vector<128x128xf32>
    %7 = arith.addf %3, %6 : vector<128x128xf32>
    %c0_6 = arith.constant 0 : index
    %c0_7 = arith.constant 0 : index
    %8 = vector.load %arg6[%c0_6, %c0_7] : memref<128x128xf32, #tpu.memory_space<vmem>>, vector<128x128xf32>
    tpu.vector_store %arg6[%c0_6, %c0_7], %7 {strides = array<i32>} : memref<128x128xf32, #tpu.memory_space<vmem>>, vector<128x128xf32>,
    %c0_i32_8 = arith.constant 0 : i32
    %9 = arith.cmpi eq, %arg1, %c0_i32_8 : i32
    %10 = arith.extui %9 : i1 to i32
    %c0_i32_9 = arith.constant 0 : i32
    %11 = arith.cmpi ne, %10, %c0_i32_9 : i32
    scf.if %11 {
      %c0_10 = arith.constant 0 : index
      %c0_11 = arith.constant 0 : index
      %12 = vector.load %arg6[%c0_10, %c0_11] : memref<128x128xf32, #tpu.memory_space<vmem>>, vector<128x128xf32>
      %c0_12 = arith.constant 0 : index
      %c0_13 = arith.constant 0 : index
      %13 = vector.load %arg4[%c0_12, %c0_13] : memref<1x128xf32, #tpu.memory_space<vmem>>, vector<1x128xf32>
      %14 = vector.broadcast %13 : vector<1x128xf32> to vector<128x128xf32>
      %15 = arith.addf %12, %14 : vector<128x128xf32>
      %cst_14 = arith.constant 0.000000e+00 : f32
      %16 = vector.broadcast %cst_14 : f32 to vector<128x128xf32>
      %17 = arith.maximumf %15, %16 : vector<128x128xf32>
      %18 = arith.truncf %17 : vector<128x128xf32> to vector<128x128xbf16>
      %c0_15 = arith.constant 0 : index
      %c0_16 = arith.constant 0 : index
      %19 = vector.load %arg5[%c0_15, %c0_16] : memref<128x128xbf16, #tpu.memory_space<vmem>>, vector<128x128xbf16>
      tpu.vector_store %arg5[%c0_15, %c0_16], %18 {strides = array<i32>} : memref<128x128xbf16, #tpu.memory_space<vmem>>, vector<128x128xbf16>,
    } else {
    }
    return
  }
  func.func @transform_0(%arg0: i32, %arg1: i32) -> (i32, i32) {
    %c0_i32 = arith.constant 0 : i32
    return %arg0, %arg1 : i32, i32
  }
  func.func @transform_1(%arg0: i32, %arg1: i32) -> (i32, i32) {
    %c0_i32 = arith.constant 0 : i32
    %c0_i32_0 = arith.constant 0 : i32
    return %arg1, %c0_i32 : i32, i32
  }
  func.func @transform_2(%arg0: i32, %arg1: i32) -> (i32, i32) {
    %c0_i32 = arith.constant 0 : i32
    %c0_i32_0 = arith.constant 0 : i32
    %c0_i32_1 = arith.constant 0 : i32
    return %c0_i32, %c0_i32_0 : i32, i32
  }
  func.func @transform_3(%arg0: i32, %arg1: i32) -> (i32, i32) {
    %c0_i32 = arith.constant 0 : i32
    %c0_i32_0 = arith.constant 0 : i32
    return %arg0, %c0_i32 : i32, i32
  }
}

module attributes {stable_mosaic.version = 11 : i64} {
  func.func @_conv_bn_shortcut_kernel(%arg0: i32, %arg1: i32, %arg2: memref<128x256xbf16, #tpu.memory_space<vmem>>, %arg3: memref<256x128xbf16, #tpu.memory_space<vmem>>, %arg4: memref<1x128xf32, #tpu.memory_space<vmem>>, %arg5: memref<128x128xbf16, #tpu.memory_space<vmem>>, %arg6: memref<128x128xbf16, #tpu.memory_space<vmem>>, %arg7: memref<1x128xf32, #tpu.memory_space<vmem>>, %arg8: memref<128x128xf32, #tpu.memory_space<vmem>>, %arg9: memref<128x128xf32, #tpu.memory_space<vmem>>) attributes {dimension_semantics = [#tpu.dimension_semantics<parallel>, #tpu.dimension_semantics<arbitrary>], iteration_bounds = array<i64: 1, 1>, scalar_prefetch = 0 : i64, scratch_operands = 1 : i64, tpu.core_type = #tpu.core_type<tc>, window_params = [{transform_indices = @transform_0, window_bounds = array<i64: 128, 256>}, {transform_indices = @transform_1, window_bounds = array<i64: 256, 128>}, {pipeline_mode = #tpu.pipeline_mode<synchronous>, transform_indices = @transform_2, window_bounds = array<i64: 1, 128>}, {transform_indices = @transform_3, window_bounds = array<i64: 128, 128>}, {pipeline_mode = #tpu.pipeline_mode<synchronous>, transform_indices = @transform_4, window_bounds = array<i64: 128, 128>}, {pipeline_mode = #tpu.pipeline_mode<synchronous>, transform_indices = @transform_5, window_bounds = array<i64: 1, 128>}, {transform_indices = @transform_6, window_bounds = array<i64: 128, 128>}]} {
    %c0_i32 = arith.constant 0 : i32
    %0 = arith.cmpi eq, %arg1, %c0_i32 : i32
    %1 = arith.extui %0 : i1 to i32
    %c0_i32_0 = arith.constant 0 : i32
    %2 = arith.cmpi ne, %1, %c0_i32_0 : i32
    scf.if %2 {
      %c0_10 = arith.constant 0 : index
      %c0_11 = arith.constant 0 : index
      %12 = vector.load %arg5[%c0_10, %c0_11] : memref<128x128xbf16, #tpu.memory_space<vmem>>, vector<128x128xbf16>
      %c0_12 = arith.constant 0 : index
      %c0_13 = arith.constant 0 : index
      %13 = vector.load %arg6[%c0_12, %c0_13] : memref<128x128xbf16, #tpu.memory_space<vmem>>, vector<128x128xbf16>
      %cst_14 = arith.constant dense<0.000000e+00> : vector<128x128xf32>
      %14 = tpu.matmul %12, %13, %cst_14 {dimension_numbers = #tpu.dot_dimension_numbers<[1], [0], [0], [1], [0, 0, 1, 1], [], []>} : vector<128x128xbf16>, vector<128x128xbf16>, vector<128x128xf32> -> vector<128x128xf32>
      %c0_15 = arith.constant 0 : index
      %c0_16 = arith.constant 0 : index
      %15 = vector.load %arg4[%c0_15, %c0_16] : memref<1x128xf32, #tpu.memory_space<vmem>>, vector<1x128xf32>
      %16 = vector.broadcast %15 : vector<1x128xf32> to vector<128x128xf32>
      %17 = arith.addf %14, %16 : vector<128x128xf32>
      %c0_17 = arith.constant 0 : index
      %c0_18 = arith.constant 0 : index
      %18 = vector.load %arg7[%c0_17, %c0_18] : memref<1x128xf32, #tpu.memory_space<vmem>>, vector<1x128xf32>
      %19 = vector.broadcast %18 : vector<1x128xf32> to vector<128x128xf32>
      %20 = arith.addf %17, %19 : vector<128x128xf32>
      %c0_19 = arith.constant 0 : index
      %c0_20 = arith.constant 0 : index
      %21 = vector.load %arg9[%c0_19, %c0_20] : memref<128x128xf32, #tpu.memory_space<vmem>>, vector<128x128xf32>
      tpu.vector_store %arg9[%c0_19, %c0_20], %20 {strides = array<i32>} : memref<128x128xf32, #tpu.memory_space<vmem>>, vector<128x128xf32>,
    } else {
    }
    %c0 = arith.constant 0 : index
    %c0_1 = arith.constant 0 : index
    %3 = vector.load %arg9[%c0, %c0_1] : memref<128x128xf32, #tpu.memory_space<vmem>>, vector<128x128xf32>
    %c0_2 = arith.constant 0 : index
    %c0_3 = arith.constant 0 : index
    %4 = vector.load %arg2[%c0_2, %c0_3] : memref<128x256xbf16, #tpu.memory_space<vmem>>, vector<128x256xbf16>
    %c0_4 = arith.constant 0 : index
    %c0_5 = arith.constant 0 : index
    %5 = vector.load %arg3[%c0_4, %c0_5] : memref<256x128xbf16, #tpu.memory_space<vmem>>, vector<256x128xbf16>
    %cst = arith.constant dense<0.000000e+00> : vector<128x128xf32>
    %6 = tpu.matmul %4, %5, %cst {dimension_numbers = #tpu.dot_dimension_numbers<[1], [0], [0], [1], [0, 0, 1, 1], [], []>} : vector<128x256xbf16>, vector<256x128xbf16>, vector<128x128xf32> -> vector<128x128xf32>
    %7 = arith.addf %3, %6 : vector<128x128xf32>
    %c0_6 = arith.constant 0 : index
    %c0_7 = arith.constant 0 : index
    %8 = vector.load %arg9[%c0_6, %c0_7] : memref<128x128xf32, #tpu.memory_space<vmem>>, vector<128x128xf32>
    tpu.vector_store %arg9[%c0_6, %c0_7], %7 {strides = array<i32>} : memref<128x128xf32, #tpu.memory_space<vmem>>, vector<128x128xf32>,
    %c0_i32_8 = arith.constant 0 : i32
    %9 = arith.cmpi eq, %arg1, %c0_i32_8 : i32
    %10 = arith.extui %9 : i1 to i32
    %c0_i32_9 = arith.constant 0 : i32
    %11 = arith.cmpi ne, %10, %c0_i32_9 : i32
    scf.if %11 {
      %c0_10 = arith.constant 0 : index
      %c0_11 = arith.constant 0 : index
      %12 = vector.load %arg9[%c0_10, %c0_11] : memref<128x128xf32, #tpu.memory_space<vmem>>, vector<128x128xf32>
      %cst_12 = arith.constant 0.000000e+00 : f32
      %13 = vector.broadcast %cst_12 : f32 to vector<128x128xf32>
      %14 = arith.maximumf %12, %13 : vector<128x128xf32>
      %c0_13 = arith.constant 0 : index
      %c0_14 = arith.constant 0 : index
      %15 = vector.load %arg8[%c0_13, %c0_14] : memref<128x128xf32, #tpu.memory_space<vmem>>, vector<128x128xf32>
      tpu.vector_store %arg8[%c0_13, %c0_14], %14 {strides = array<i32>} : memref<128x128xf32, #tpu.memory_space<vmem>>, vector<128x128xf32>,
    } else {
    }
    return
  }
  func.func @transform_0(%arg0: i32, %arg1: i32) -> (i32, i32) {
    %c0_i32 = arith.constant 0 : i32
    return %arg0, %arg1 : i32, i32
  }
  func.func @transform_1(%arg0: i32, %arg1: i32) -> (i32, i32) {
    %c0_i32 = arith.constant 0 : i32
    %c0_i32_0 = arith.constant 0 : i32
    return %arg1, %c0_i32 : i32, i32
  }
  func.func @transform_2(%arg0: i32, %arg1: i32) -> (i32, i32) {
    %c0_i32 = arith.constant 0 : i32
    %c0_i32_0 = arith.constant 0 : i32
    %c0_i32_1 = arith.constant 0 : i32
    return %c0_i32, %c0_i32_0 : i32, i32
  }
  func.func @transform_3(%arg0: i32, %arg1: i32) -> (i32, i32) {
    %c0_i32 = arith.constant 0 : i32
    %c0_i32_0 = arith.constant 0 : i32
    return %arg0, %c0_i32 : i32, i32
  }
  func.func @transform_4(%arg0: i32, %arg1: i32) -> (i32, i32) {
    %c0_i32 = arith.constant 0 : i32
    %c0_i32_0 = arith.constant 0 : i32
    %c0_i32_1 = arith.constant 0 : i32
    return %c0_i32, %c0_i32_0 : i32, i32
  }
  func.func @transform_5(%arg0: i32, %arg1: i32) -> (i32, i32) {
    %c0_i32 = arith.constant 0 : i32
    %c0_i32_0 = arith.constant 0 : i32
    %c0_i32_1 = arith.constant 0 : i32
    return %c0_i32, %c0_i32_0 : i32, i32
  }
  func.func @transform_6(%arg0: i32, %arg1: i32) -> (i32, i32) {
    %c0_i32 = arith.constant 0 : i32
    %c0_i32_0 = arith.constant 0 : i32
    return %arg0, %c0_i32 : i32, i32
  }
}

</mosaic_0001>

<llo_original>
// kernel: basic_block_forward.2
$region0: #{basic_block_forward.2}
  #allocation0 [shape = 'u32[]', space=smem, size = 0x4, offset = 0x4, fixed_abs, tag = 'smem constant byte address 0x4 - core index']
  #allocation1 [shape = 'u32[144,128]{1,0:T(1,128)}', space=vmem, size = 0x12000, scoped, tag = 'internal scratch']
  #allocation2 [shape = 'f32[128,128]{1,0:T(8,128)}', space=vmem, size = 0x10000, scoped, tag = 'scratch operand']
  %s0 = inlined_call_operand.vmem [shape: bf16[128,128], index: 0, kind: input, shape index: {}]
  %s1 = inlined_call_operand.vmem [shape: bf16[128,128], index: 1, kind: input, shape index: {}]
  %s2 = inlined_call_operand.vmem [shape: f32[1,128], index: 2, kind: input, shape index: {}]
  %s3 = inlined_call_operand.vmem [shape: bf16[128,128], index: 3, kind: output, shape index: {}]
  %s4 = sld [smem:[#allocation0]]
  $region30: #{basic_block_forward.2} parent=0
    _
  %s6 = ssub.s32 1, %s4
  %s7 = scalar_select 0, %s6, %s4
  // Predicated region
  $region2: #{basic_block_forward.2} parent=0 // pred_check
    _
  $region3: #{basic_block_forward.2} parent=0 // pred_check_branch
    %9 = sbr.rel (0) target = $region5
  $region4: #{basic_block_forward.2} parent=0 // pred_region
    _
  $region5: #{basic_block_forward.2} parent=0 // pred_fallthru
    _
  // Predicated region
  $region6: #{basic_block_forward.2} parent=0 // pred_check
    _
  $region7: #{basic_block_forward.2} parent=0 // pred_check_branch
    %11 = sbr.rel (0) target = $region9
  $region8: #{basic_block_forward.2} parent=0 // pred_region
    _
  $region9: #{basic_block_forward.2} parent=0 // pred_fallthru
    _
  // Predicated region
  $region10: #{basic_block_forward.2} parent=0 // pred_check
    _
  $region11: #{basic_block_forward.2} parent=0 // pred_check_branch
    %13 = sbr.rel (0) target = $region13
  $region12: #{basic_block_forward.2} parent=0 // pred_region
    _
  $region13: #{basic_block_forward.2} parent=0 // pred_fallthru
    _
  %p15 = scmp.eq.s32.totalorder 0, 0
  // Predicated region
  $region14: #{basic_block_forward.2} parent=0 // pred_check
    %p16 = pneg %p15
  $region15: #{basic_block_forward.2} parent=0 // pred_check_branch
    %18 = sbr.rel (%p16) target = $region17
  $region16: #{basic_block_forward.2} parent=0 // pred_region
    %19 = vst [vmem:[#allocation2] sm:$0xff] 0.0
    %20 = vst [vmem:[#allocation2 + $0x8] sm:$0xff] 0.0
    %21 = vst [vmem:[#allocation2 + $0x10] sm:$0xff] 0.0
    %22 = vst [vmem:[#allocation2 + $0x18] sm:$0xff] 0.0
    %23 = vst [vmem:[#allocation2 + $0x20] sm:$0xff] 0.0
    %24 = vst [vmem:[#allocation2 + $0x28] sm:$0xff] 0.0
    %25 = vst [vmem:[#allocation2 + $0x30] sm:$0xff] 0.0
    %26 = vst [vmem:[#allocation2 + $0x38] sm:$0xff] 0.0
    %27 = vst [vmem:[#allocation2 + $0x40] sm:$0xff] 0.0
    %28 = vst [vmem:[#allocation2 + $0x48] sm:$0xff] 0.0
    %29 = vst [vmem:[#allocation2 + $0x50] sm:$0xff] 0.0
    %30 = vst [vmem:[#allocation2 + $0x58] sm:$0xff] 0.0
    %31 = vst [vmem:[#allocation2 + $0x60] sm:$0xff] 0.0
    %32 = vst [vmem:[#allocation2 + $0x68] sm:$0xff] 0.0
    %33 = vst [vmem:[#allocation2 + $0x70] sm:$0xff] 0.0
    %34 = vst [vmem:[#allocation2 + $0x78] sm:$0xff] 0.0
  $region17: #{basic_block_forward.2} parent=0 // pred_fallthru
    _
  %v35 = vld [vmem:[#allocation2] sm:$0xff]
  %v36 = vld [vmem:[#allocation2 + $0x8] sm:$0xff]
  %v37 = vld [vmem:[#allocation2 + $0x10] sm:$0xff]
  %v38 = vld [vmem:[#allocation2 + $0x18] sm:$0xff]
  %v39 = vld [vmem:[#allocation2 + $0x20] sm:$0xff]
  %v40 = vld [vmem:[#allocation2 + $0x28] sm:$0xff]
  %v41 = vld [vmem:[#allocation2 + $0x30] sm:$0xff]
  %v42 = vld [vmem:[#allocation2 + $0x38] sm:$0xff]
  %v43 = vld [vmem:[#allocation2 + $0x40] sm:$0xff]
  %v44 = vld [vmem:[#allocation2 + $0x48] sm:$0xff]
  %v45 = vld [vmem:[#allocation2 + $0x50] sm:$0xff]
  %v46 = vld [vmem:[#allocation2 + $0x58] sm:$0xff]
  %v47 = vld [vmem:[#allocation2 + $0x60] sm:$0xff]
  %v48 = vld [vmem:[#allocation2 + $0x68] sm:$0xff]
  %v49 = vld [vmem:[#allocation2 + $0x70] sm:$0xff]
  %v50 = vld [vmem:[#allocation2 + $0x78] sm:$0xff]
  %v51 = vld [vmem:[%s0] sm:$0xf]
  %v52 = vld [vmem:[%s0 + $0x4] sm:$0xf]
  %v53 = vld [vmem:[%s0 + $0x8] sm:$0xf]
  %v54 = vld [vmem:[%s0 + $0xc] sm:$0xf]
  %v55 = vld [vmem:[%s0 + $0x10] sm:$0xf]
  %v56 = vld [vmem:[%s0 + $0x14] sm:$0xf]
  %v57 = vld [vmem:[%s0 + $0x18] sm:$0xf]
  %v58 = vld [vmem:[%s0 + $0x1c] sm:$0xf]
  %v59 = vld [vmem:[%s0 + $0x20] sm:$0xf]
  %v60 = vld [vmem:[%s0 + $0x24] sm:$0xf]
  %v61 = vld [vmem:[%s0 + $0x28] sm:$0xf]
  %v62 = vld [vmem:[%s0 + $0x2c] sm:$0xf]
  %v63 = vld [vmem:[%s0 + $0x30] sm:$0xf]
  %v64 = vld [vmem:[%s0 + $0x34] sm:$0xf]
  %v65 = vld [vmem:[%s0 + $0x38] sm:$0xf]
  %v66 = vld [vmem:[%s0 + $0x3c] sm:$0xf]
  %v67 = vld [vmem:[%s1] sm:$0xf]
  %v68 = vld [vmem:[%s1 + $0x4] sm:$0xf]
  %v69 = vld [vmem:[%s1 + $0x8] sm:$0xf]
  %v70 = vld [vmem:[%s1 + $0xc] sm:$0xf]
  %v71 = vld [vmem:[%s1 + $0x10] sm:$0xf]
  %v72 = vld [vmem:[%s1 + $0x14] sm:$0xf]
  %v73 = vld [vmem:[%s1 + $0x18] sm:$0xf]
  %v74 = vld [vmem:[%s1 + $0x1c] sm:$0xf]
  %v75 = vld [vmem:[%s1 + $0x20] sm:$0xf]
  %v76 = vld [vmem:[%s1 + $0x24] sm:$0xf]
  %v77 = vld [vmem:[%s1 + $0x28] sm:$0xf]
  %v78 = vld [vmem:[%s1 + $0x2c] sm:$0xf]
  %v79 = vld [vmem:[%s1 + $0x30] sm:$0xf]
  %v80 = vld [vmem:[%s1 + $0x34] sm:$0xf]
  %v81 = vld [vmem:[%s1 + $0x38] sm:$0xf]
  %v82 = vld [vmem:[%s1 + $0x3c] sm:$0xf]
  %v99 = vunpack.c.l.b16 %v51
  %v100 = vunpack.c.l.b16 %v52
  %v101 = vunpack.c.l.b16 %v53
  %v102 = vunpack.c.l.b16 %v54
  %v103 = vunpack.c.l.b16 %v55
  %v104 = vunpack.c.l.b16 %v56
  %v105 = vunpack.c.l.b16 %v57
  %v106 = vunpack.c.l.b16 %v58
  %v107 = vunpack.c.l.b16 %v59
  %v108 = vunpack.c.l.b16 %v60
  %v109 = vunpack.c.l.b16 %v61
  %v110 = vunpack.c.l.b16 %v62
  %v111 = vunpack.c.l.b16 %v63
  %v112 = vunpack.c.l.b16 %v64
  %v113 = vunpack.c.l.b16 %v65
  %v114 = vunpack.c.l.b16 %v66
  %v115 = vpack.c.b16 %v100, %v99
  %v116 = vpack.c.b16 %v102, %v101
  %v117 = vpack.c.b16 %v104, %v103
  %v118 = vpack.c.b16 %v106, %v105
  %v119 = vpack.c.b16 %v108, %v107
  %v120 = vpack.c.b16 %v110, %v109
  %v121 = vpack.c.b16 %v112, %v111
  %v122 = vpack.c.b16 %v114, %v113
  %v147 = vunpack.c.l.b16 %v67
  %v148 = vunpack.c.l.b16 %v68
  %v149 = vunpack.c.l.b16 %v69
  %v150 = vunpack.c.l.b16 %v70
  %v151 = vunpack.c.l.b16 %v71
  %v152 = vunpack.c.l.b16 %v72
  %v153 = vunpack.c.l.b16 %v73
  %v154 = vunpack.c.l.b16 %v74
  %v155 = vunpack.c.l.b16 %v75
  %v156 = vunpack.c.l.b16 %v76
  %v157 = vunpack.c.l.b16 %v77
  %v158 = vunpack.c.l.b16 %v78
  %v159 = vunpack.c.l.b16 %v79
  %v160 = vunpack.c.l.b16 %v80
  %v161 = vunpack.c.l.b16 %v81
  %v162 = vunpack.c.l.b16 %v82
  %v163 = vpack.c.b16 %v148, %v147
  %v164 = vpack.c.b16 %v150, %v149
  %v165 = vpack.c.b16 %v152, %v151
  %v166 = vpack.c.b16 %v154, %v153
  %v167 = vpack.c.b16 %v156, %v155
  %v168 = vpack.c.b16 %v158, %v157
  %v169 = vpack.c.b16 %v160, %v159
  %v170 = vpack.c.b16 %v162, %v161
  %179 = vmatprep.subr.bf16.mxu0 0
  %180 = vmatpush1.bf16.msra.mxu0 %v170
  %181 = vmatprep.subr.bf16.mxu0 0
  %182 = vmatpush1.bf16.msra.mxu0 %v169
  %183 = vmatprep.subr.bf16.mxu0 0
  %184 = vmatpush1.bf16.msra.mxu0 %v168
  %185 = vmatprep.subr.bf16.mxu0 0
  %186 = vmatpush1.bf16.msra.mxu0 %v167
  %187 = vmatprep.subr.bf16.mxu0 0
  %188 = vmatpush1.bf16.msra.mxu0 %v166
  %189 = vmatprep.subr.bf16.mxu0 0
  %190 = vmatpush1.bf16.msra.mxu0 %v165
  %191 = vmatprep.subr.bf16.mxu0 0
  %192 = vmatpush1.bf16.msra.mxu0 %v164
  %193 = vmatprep.subr.bf16.mxu0 0
  %194 = vmatpush1.bf16.msra.mxu0 %v163
  %195 = vmatprep.subr.bf16.mxu0 0
  %196 = vmatpush2.bf16.msra.mxu0 0
  %197 = vmatprep.subr.bf16.mxu0 0
  %198 = vmatpush2.bf16.msra.mxu0 0
  %199 = vmatprep.subr.bf16.mxu0 0
  %200 = vmatpush2.bf16.msra.mxu0 0
  %201 = vmatprep.subr.bf16.mxu0 0
  %202 = vmatpush2.bf16.msra.mxu0 0
  %203 = vmatprep.subr.bf16.mxu0 0
  %204 = vmatpush2.bf16.msra.mxu0 0
  %205 = vmatprep.subr.bf16.mxu0 0
  %206 = vmatpush2.bf16.msra.mxu0 0
  %207 = vmatprep.subr.bf16.mxu0 0
  %208 = vmatpush2.bf16.msra.mxu0 0
  %209 = vmatprep.subr.bf16.mxu0 0
  %210 = vmatpush2.bf16.msra.mxu0 0
  %211 = vmatprep.mubr.bf16.mxu0 0
  %212 = vmatmul.mubr.bf16.gmra.mxu0 %v115
  %v213 = vpop.f32.mrf.mxu0
  %v214 = vadd.f32 0.0, %v213
  %v215 = vpop.f32.mrf.mxu0
  %v216 = vpop.f32.mrf.mxu0
  %v217 = vadd.f32 0.0, %v216
  %v218 = vpop.f32.mrf.mxu0
  %219 = vmatprep.mubr.bf16.mxu0 0
  %220 = vmatmul.mubr.bf16.gmra.mxu0 %v116
  %v221 = vpop.f32.mrf.mxu0
  %v222 = vadd.f32 0.0, %v221
  %v223 = vpop.f32.mrf.mxu0
  %v224 = vpop.f32.mrf.mxu0
  %v225 = vadd.f32 0.0, %v224
  %v226 = vpop.f32.mrf.mxu0
  %227 = vmatprep.mubr.bf16.mxu0 0
  %228 = vmatmul.mubr.bf16.gmra.mxu0 %v117
  %v229 = vpop.f32.mrf.mxu0
  %v230 = vadd.f32 0.0, %v229
  %v231 = vpop.f32.mrf.mxu0
  %v232 = vpop.f32.mrf.mxu0
  %v233 = vadd.f32 0.0, %v232
  %v234 = vpop.f32.mrf.mxu0
  %235 = vmatprep.mubr.bf16.mxu0 0
  %236 = vmatmul.mubr.bf16.gmra.mxu0 %v118
  %v237 = vpop.f32.mrf.mxu0
  %v238 = vadd.f32 0.0, %v237
  %v239 = vpop.f32.mrf.mxu0
  %v240 = vpop.f32.mrf.mxu0
  %v241 = vadd.f32 0.0, %v240
  %v242 = vpop.f32.mrf.mxu0
  %243 = vmatprep.mubr.bf16.mxu0 0
  %244 = vmatmul.mubr.bf16.gmra.mxu0 %v119
  %v245 = vpop.f32.mrf.mxu0
  %v246 = vadd.f32 0.0, %v245
  %v247 = vpop.f32.mrf.mxu0
  %v248 = vpop.f32.mrf.mxu0
  %v249 = vadd.f32 0.0, %v248
  %v250 = vpop.f32.mrf.mxu0
  %251 = vmatprep.mubr.bf16.mxu0 0
  %252 = vmatmul.mubr.bf16.gmra.mxu0 %v120
  %v253 = vpop.f32.mrf.mxu0
  %v254 = vadd.f32 0.0, %v253
  %v255 = vpop.f32.mrf.mxu0
  %v256 = vpop.f32.mrf.mxu0
  %v257 = vadd.f32 0.0, %v256
  %v258 = vpop.f32.mrf.mxu0
  %259 = vmatprep.mubr.bf16.mxu0 0
  %260 = vmatmul.mubr.bf16.gmra.mxu0 %v121
  %v261 = vpop.f32.mrf.mxu0
  %v262 = vadd.f32 0.0, %v261
  %v263 = vpop.f32.mrf.mxu0
  %v264 = vpop.f32.mrf.mxu0
  %v265 = vadd.f32 0.0, %v264
  %v266 = vpop.f32.mrf.mxu0
  %267 = vmatprep.mubr.bf16.mxu0 0
  %268 = vmatmul.mubr.bf16.gmra.mxu0 %v122
  %v269 = vpop.f32.mrf.mxu0
  %v270 = vadd.f32 0.0, %v269
  %v271 = vpop.f32.mrf.mxu0
  %v272 = vpop.f32.mrf.mxu0
  %v273 = vadd.f32 0.0, %v272
  %v274 = vpop.f32.mrf.mxu0
  %275 = vdwg.mxu0
  %v276 = vadd.f32 %v35, %v214
  %v277 = vadd.f32 %v36, %v217
  %v278 = vadd.f32 %v37, %v222
  %v279 = vadd.f32 %v38, %v225
  %v280 = vadd.f32 %v39, %v230
  %v281 = vadd.f32 %v40, %v233
  %v282 = vadd.f32 %v41, %v238
  %v283 = vadd.f32 %v42, %v241
  %v284 = vadd.f32 %v43, %v246
  %v285 = vadd.f32 %v44, %v249
  %v286 = vadd.f32 %v45, %v254
  %v287 = vadd.f32 %v46, %v257
  %v288 = vadd.f32 %v47, %v262
  %v289 = vadd.f32 %v48, %v265
  %v290 = vadd.f32 %v49, %v270
  %v291 = vadd.f32 %v50, %v273
  %292 = vst [vmem:[#allocation2] sm:$0xff] %v276
  %293 = vst [vmem:[#allocation2 + $0x8] sm:$0xff] %v277
  %294 = vst [vmem:[#allocation2 + $0x10] sm:$0xff] %v278
  %295 = vst [vmem:[#allocation2 + $0x18] sm:$0xff] %v279
  %296 = vst [vmem:[#allocation2 + $0x20] sm:$0xff] %v280
  %297 = vst [vmem:[#allocation2 + $0x28] sm:$0xff] %v281
  %298 = vst [vmem:[#allocation2 + $0x30] sm:$0xff] %v282
  %299 = vst [vmem:[#allocation2 + $0x38] sm:$0xff] %v283
  %300 = vst [vmem:[#allocation2 + $0x40] sm:$0xff] %v284
  %301 = vst [vmem:[#allocation2 + $0x48] sm:$0xff] %v285
  %302 = vst [vmem:[#allocation2 + $0x50] sm:$0xff] %v286
  %303 = vst [vmem:[#allocation2 + $0x58] sm:$0xff] %v287
  %304 = vst [vmem:[#allocation2 + $0x60] sm:$0xff] %v288
  %305 = vst [vmem:[#allocation2 + $0x68] sm:$0xff] %v289
  %306 = vst [vmem:[#allocation2 + $0x70] sm:$0xff] %v290
  %307 = vst [vmem:[#allocation2 + $0x78] sm:$0xff] %v291
  // Predicated region
  $region18: #{basic_block_forward.2} parent=0 // pred_check
    %p308 = pneg %p15
  $region19: #{basic_block_forward.2} parent=0 // pred_check_branch
    %310 = sbr.rel (%p308) target = $region21
  $region20: #{basic_block_forward.2} parent=0 // pred_region
    %v311 = vld [vmem:[#allocation2] sm:$0xff]
    %v312 = vld [vmem:[#allocation2 + $0x8] sm:$0xff]
    %v313 = vld [vmem:[#allocation2 + $0x10] sm:$0xff]
    %v314 = vld [vmem:[#allocation2 + $0x18] sm:$0xff]
    %v315 = vld [vmem:[#allocation2 + $0x20] sm:$0xff]
    %v316 = vld [vmem:[#allocation2 + $0x28] sm:$0xff]
    %v317 = vld [vmem:[#allocation2 + $0x30] sm:$0xff]
    %v318 = vld [vmem:[#allocation2 + $0x38] sm:$0xff]
    %v319 = vld [vmem:[#allocation2 + $0x40] sm:$0xff]
    %v320 = vld [vmem:[#allocation2 + $0x48] sm:$0xff]
    %v321 = vld [vmem:[#allocation2 + $0x50] sm:$0xff]
    %v322 = vld [vmem:[#allocation2 + $0x58] sm:$0xff]
    %v323 = vld [vmem:[#allocation2 + $0x60] sm:$0xff]
    %v324 = vld [vmem:[#allocation2 + $0x68] sm:$0xff]
    %v325 = vld [vmem:[#allocation2 + $0x70] sm:$0xff]
    %v326 = vld [vmem:[#allocation2 + $0x78] sm:$0xff]
    %v327 = vld [vmem:[%s2] sm:$0x1]
    %v329 = vlaneseq
    %v330 = vshrl.u32 %v329, 7
    %v331 = vsub.s32 0, %v330
    %v332 = vrot.slane %v327, %v331
    %v334 = vadd.f32 %v311, %v332
    %v335 = vadd.f32 %v312, %v332
    %v336 = vadd.f32 %v313, %v332
    %v337 = vadd.f32 %v314, %v332
    %v338 = vadd.f32 %v315, %v332
    %v339 = vadd.f32 %v316, %v332
    %v340 = vadd.f32 %v317, %v332
    %v341 = vadd.f32 %v318, %v332
    %v342 = vadd.f32 %v319, %v332
    %v343 = vadd.f32 %v320, %v332
    %v344 = vadd.f32 %v321, %v332
    %v345 = vadd.f32 %v322, %v332
    %v346 = vadd.f32 %v323, %v332
    %v347 = vadd.f32 %v324, %v332
    %v348 = vadd.f32 %v325, %v332
    %v349 = vadd.f32 %v326, %v332
    %v350 = vmax.f32 %v334, 0.0
    %v351 = vmax.f32 %v335, 0.0
    %v352 = vmax.f32 %v336, 0.0
    %v353 = vmax.f32 %v337, 0.0
    %v354 = vmax.f32 %v338, 0.0
    %v355 = vmax.f32 %v339, 0.0
    %v356 = vmax.f32 %v340, 0.0
    %v357 = vmax.f32 %v341, 0.0
    %v358 = vmax.f32 %v342, 0.0
    %v359 = vmax.f32 %v343, 0.0
    %v360 = vmax.f32 %v344, 0.0
    %v361 = vmax.f32 %v345, 0.0
    %v362 = vmax.f32 %v346, 0.0
    %v363 = vmax.f32 %v347, 0.0
    %v364 = vmax.f32 %v348, 0.0
    %v365 = vmax.f32 %v349, 0.0
    %v366 = vpack.c.bf16 %v351, %v350
    %v367 = vpack.c.bf16 %v353, %v352
    %v368 = vpack.c.bf16 %v355, %v354
    %v369 = vpack.c.bf16 %v357, %v356
    %v370 = vpack.c.bf16 %v359, %v358
    %v371 = vpack.c.bf16 %v361, %v360
    %v372 = vpack.c.bf16 %v363, %v362
    %v373 = vpack.c.bf16 %v365, %v364
    %v382 = vunpack.c.l.b16 %v366
    %v383 = vunpack.c.h.b16 %v366
    %v384 = vunpack.c.l.b16 %v367
    %v385 = vunpack.c.h.b16 %v367
    %v386 = vunpack.c.l.b16 %v368
    %v387 = vunpack.c.h.b16 %v368
    %v388 = vunpack.c.l.b16 %v369
    %v389 = vunpack.c.h.b16 %v369
    %v390 = vunpack.c.l.b16 %v370
    %v391 = vunpack.c.h.b16 %v370
    %v392 = vunpack.c.l.b16 %v371
    %v393 = vunpack.c.h.b16 %v371
    %v394 = vunpack.c.l.b16 %v372
    %v395 = vunpack.c.h.b16 %v372
    %v396 = vunpack.c.l.b16 %v373
    %v397 = vunpack.c.h.b16 %v373
    %v398 = vpack.c.b16 %v382, %v382
    %v399 = vpack.c.b16 %v383, %v383
    %v400 = vpack.c.b16 %v384, %v384
    %v401 = vpack.c.b16 %v385, %v385
    %v402 = vpack.c.b16 %v386, %v386
    %v403 = vpack.c.b16 %v387, %v387
    %v404 = vpack.c.b16 %v388, %v388
    %v405 = vpack.c.b16 %v389, %v389
    %v406 = vpack.c.b16 %v390, %v390
    %v407 = vpack.c.b16 %v391, %v391
    %v408 = vpack.c.b16 %v392, %v392
    %v409 = vpack.c.b16 %v393, %v393
    %v410 = vpack.c.b16 %v394, %v394
    %v411 = vpack.c.b16 %v395, %v395
    %v412 = vpack.c.b16 %v396, %v396
    %v413 = vpack.c.b16 %v397, %v397
    %430 = vst [vmem:[%s3] sm:$0xf] %v398
    %431 = vst [vmem:[%s3 + $0x4] sm:$0xf] %v399
    %432 = vst [vmem:[%s3 + $0x8] sm:$0xf] %v400
    %433 = vst [vmem:[%s3 + $0xc] sm:$0xf] %v401
    %434 = vst [vmem:[%s3 + $0x10] sm:$0xf] %v402
    %435 = vst [vmem:[%s3 + $0x14] sm:$0xf] %v403
    %436 = vst [vmem:[%s3 + $0x18] sm:$0xf] %v404
    %437 = vst [vmem:[%s3 + $0x1c] sm:$0xf] %v405
    %438 = vst [vmem:[%s3 + $0x20] sm:$0xf] %v406
    %439 = vst [vmem:[%s3 + $0x24] sm:$0xf] %v407
    %440 = vst [vmem:[%s3 + $0x28] sm:$0xf] %v408
    %441 = vst [vmem:[%s3 + $0x2c] sm:$0xf] %v409
    %442 = vst [vmem:[%s3 + $0x30] sm:$0xf] %v410
    %443 = vst [vmem:[%s3 + $0x34] sm:$0xf] %v411
    %444 = vst [vmem:[%s3 + $0x38] sm:$0xf] %v412
    %445 = vst [vmem:[%s3 + $0x3c] sm:$0xf] %v413
  $region21: #{basic_block_forward.2} parent=0 // pred_fallthru
    _
  // Predicated region
  $region22: #{basic_block_forward.2} parent=0 // pred_check
    _
  $region23: #{basic_block_forward.2} parent=0 // pred_check_branch
    %447 = sbr.rel (0) target = $region25
  $region24: #{basic_block_forward.2} parent=0 // pred_region
    _
  $region25: #{basic_block_forward.2} parent=0 // pred_fallthru
    _
  // Predicated region
  $region26: #{basic_block_forward.2} parent=0 // pred_check
    _
  $region27: #{basic_block_forward.2} parent=0 // pred_check_branch
    %449 = sbr.rel (0) target = $region29
  $region28: #{basic_block_forward.2} parent=0 // pred_region
    _
  $region29: #{basic_block_forward.2} parent=0 // pred_fallthru
    _

// kernel: basic_block_forward.3
$region0: #{basic_block_forward.3}
  #allocation0 [shape = 'u32[]', space=smem, size = 0x4, offset = 0x4, fixed_abs, tag = 'smem constant byte address 0x4 - core index']
  #allocation1 [shape = 'u32[144,128]{1,0:T(1,128)}', space=vmem, size = 0x12000, scoped, tag = 'internal scratch']
  #allocation2 [shape = 'f32[128,128]{1,0:T(8,128)}', space=vmem, size = 0x10000, scoped, tag = 'scratch operand']
  %s0 = inlined_call_operand.vmem [shape: bf16[128,256], index: 0, kind: input, shape index: {}]
  %s1 = inlined_call_operand.vmem [shape: bf16[256,128], index: 1, kind: input, shape index: {}]
  %s2 = inlined_call_operand.vmem [shape: f32[1,128], index: 2, kind: input, shape index: {}]
  %s3 = inlined_call_operand.vmem [shape: bf16[128,128], index: 3, kind: input, shape index: {}]
  %s4 = inlined_call_operand.vmem [shape: bf16[128,128], index: 4, kind: input, shape index: {}]
  %s5 = inlined_call_operand.vmem [shape: f32[1,128], index: 5, kind: input, shape index: {}]
  %s6 = inlined_call_operand.hbm [shape: f32[128,128], index: 6, kind: output, shape index: {}]
  %s7 = sld [smem:[#allocation0]]
  $region42: #{basic_block_forward.3} parent=0
    _
  %s9 = ssub.s32 1, %s7
  %s10 = scalar_select 0, %s9, %s7
  $region1: #{basic_block_forward.3} parent=0
    #allocation3 [shape = 'u8[65536]{0}', space=vmem, size = 0x10000, scoped, tag = 'output window, operand 0, single buffered']
    #allocation4 [shape = 's32[1]{0}', space=sflag, size = 0x4, scoped, tag = 'scoped memory for basic_block_forward.3']
    %11 = vsyncpa [#allocation4], 0
    // Predicated region
    $region2: #{basic_block_forward.3} parent=1 // pred_check
      _
    $region3: #{basic_block_forward.3} parent=1 // pred_check_branch
      %13 = sbr.rel (0) target = $region5
    $region4: #{basic_block_forward.3} parent=1 // pred_region
      _
    $region5: #{basic_block_forward.3} parent=1 // pred_fallthru
      _
    // Predicated region
    $region6: #{basic_block_forward.3} parent=1 // pred_check
      _
    $region7: #{basic_block_forward.3} parent=1 // pred_check_branch
      %15 = sbr.rel (0) target = $region9
    $region8: #{basic_block_forward.3} parent=1 // pred_region
      _
    $region9: #{basic_block_forward.3} parent=1 // pred_fallthru
      _
    // Predicated region
    $region10: #{basic_block_forward.3} parent=1 // pred_check
      _
    $region11: #{basic_block_forward.3} parent=1 // pred_check_branch
      %17 = sbr.rel (0) target = $region13
    $region12: #{basic_block_forward.3} parent=1 // pred_region
      _
    $region13: #{basic_block_forward.3} parent=1 // pred_fallthru
      _
    // Predicated region
    $region14: #{basic_block_forward.3} parent=1 // pred_check
      _
    $region15: #{basic_block_forward.3} parent=1 // pred_check_branch
      %19 = sbr.rel (0) target = $region17
    $region16: #{basic_block_forward.3} parent=1 // pred_region
      _
    $region17: #{basic_block_forward.3} parent=1 // pred_fallthru
      _
    // Predicated region
    $region18: #{basic_block_forward.3} parent=1 // pred_check
      _
    $region19: #{basic_block_forward.3} parent=1 // pred_check_branch
      %21 = sbr.rel (0) target = $region21
    $region20: #{basic_block_forward.3} parent=1 // pred_region
      _
    $region21: #{basic_block_forward.3} parent=1 // pred_fallthru
      _
    // Predicated region
    $region22: #{basic_block_forward.3} parent=1 // pred_check
      _
    $region23: #{basic_block_forward.3} parent=1 // pred_check_branch
      %23 = sbr.rel (0) target = $region25
    $region24: #{basic_block_forward.3} parent=1 // pred_region
      _
    $region25: #{basic_block_forward.3} parent=1 // pred_fallthru
      _
    %p25 = scmp.eq.s32.totalorder 0, 0
    // Predicated region
    $region26: #{basic_block_forward.3} parent=1 // pred_check
      %p26 = pneg %p25
    $region27: #{basic_block_forward.3} parent=1 // pred_check_branch
      %28 = sbr.rel (%p26) target = $region29
    $region28: #{basic_block_forward.3} parent=1 // pred_region
      %v29 = vld [vmem:[%s3] sm:$0xf]
      %v30 = vld [vmem:[%s3 + $0x4] sm:$0xf]
      %v31 = vld [vmem:[%s3 + $0x8] sm:$0xf]
      %v32 = vld [vmem:[%s3 + $0xc] sm:$0xf]
      %v33 = vld [vmem:[%s3 + $0x10] sm:$0xf]
      %v34 = vld [vmem:[%s3 + $0x14] sm:$0xf]
      %v35 = vld [vmem:[%s3 + $0x18] sm:$0xf]
      %v36 = vld [vmem:[%s3 + $0x1c] sm:$0xf]
      %v37 = vld [vmem:[%s3 + $0x20] sm:$0xf]
      %v38 = vld [vmem:[%s3 + $0x24] sm:$0xf]
      %v39 = vld [vmem:[%s3 + $0x28] sm:$0xf]
      %v40 = vld [vmem:[%s3 + $0x2c] sm:$0xf]
      %v41 = vld [vmem:[%s3 + $0x30] sm:$0xf]
      %v42 = vld [vmem:[%s3 + $0x34] sm:$0xf]
      %v43 = vld [vmem:[%s3 + $0x38] sm:$0xf]
      %v44 = vld [vmem:[%s3 + $0x3c] sm:$0xf]
      %v45 = vld [vmem:[%s4] sm:$0xf]
      %v46 = vld [vmem:[%s4 + $0x4] sm:$0xf]
      %v47 = vld [vmem:[%s4 + $0x8] sm:$0xf]
      %v48 = vld [vmem:[%s4 + $0xc] sm:$0xf]
      %v49 = vld [vmem:[%s4 + $0x10] sm:$0xf]
      %v50 = vld [vmem:[%s4 + $0x14] sm:$0xf]
      %v51 = vld [vmem:[%s4 + $0x18] sm:$0xf]
      %v52 = vld [vmem:[%s4 + $0x1c] sm:$0xf]
      %v53 = vld [vmem:[%s4 + $0x20] sm:$0xf]
      %v54 = vld [vmem:[%s4 + $0x24] sm:$0xf]
      %v55 = vld [vmem:[%s4 + $0x28] sm:$0xf]
      %v56 = vld [vmem:[%s4 + $0x2c] sm:$0xf]
      %v57 = vld [vmem:[%s4 + $0x30] sm:$0xf]
      %v58 = vld [vmem:[%s4 + $0x34] sm:$0xf]
      %v59 = vld [vmem:[%s4 + $0x38] sm:$0xf]
      %v60 = vld [vmem:[%s4 + $0x3c] sm:$0xf]
      %v61 = vld [vmem:[%s2] sm:$0x1]
      %v63 = vlaneseq
      %v64 = vshrl.u32 %v63, 7
      %v65 = vsub.s32 0, %v64
      %v66 = vrot.slane %v61, %v65
      %v84 = vunpack.c.l.b16 %v29
      %v85 = vunpack.c.l.b16 %v30
      %v86 = vunpack.c.l.b16 %v31
      %v87 = vunpack.c.l.b16 %v32
      %v88 = vunpack.c.l.b16 %v33
      %v89 = vunpack.c.l.b16 %v34
      %v90 = vunpack.c.l.b16 %v35
      %v91 = vunpack.c.l.b16 %v36
      %v92 = vunpack.c.l.b16 %v37
      %v93 = vunpack.c.l.b16 %v38
      %v94 = vunpack.c.l.b16 %v39
      %v95 = vunpack.c.l.b16 %v40
      %v96 = vunpack.c.l.b16 %v41
      %v97 = vunpack.c.l.b16 %v42
      %v98 = vunpack.c.l.b16 %v43
      %v99 = vunpack.c.l.b16 %v44
      %v100 = vpack.c.b16 %v85, %v84
      %v101 = vpack.c.b16 %v87, %v86
      %v102 = vpack.c.b16 %v89, %v88
      %v103 = vpack.c.b16 %v91, %v90
      %v104 = vpack.c.b16 %v93, %v92
      %v105 = vpack.c.b16 %v95, %v94
      %v106 = vpack.c.b16 %v97, %v96
      %v107 = vpack.c.b16 %v99, %v98
      %v132 = vunpack.c.l.b16 %v45
      %v133 = vunpack.c.l.b16 %v46
      %v134 = vunpack.c.l.b16 %v47
      %v135 = vunpack.c.l.b16 %v48
      %v136 = vunpack.c.l.b16 %v49
      %v137 = vunpack.c.l.b16 %v50
      %v138 = vunpack.c.l.b16 %v51
      %v139 = vunpack.c.l.b16 %v52
      %v140 = vunpack.c.l.b16 %v53
      %v141 = vunpack.c.l.b16 %v54
      %v142 = vunpack.c.l.b16 %v55
      %v143 = vunpack.c.l.b16 %v56
      %v144 = vunpack.c.l.b16 %v57
      %v145 = vunpack.c.l.b16 %v58
      %v146 = vunpack.c.l.b16 %v59
      %v147 = vunpack.c.l.b16 %v60
      %v148 = vpack.c.b16 %v133, %v132
      %v149 = vpack.c.b16 %v135, %v134
      %v150 = vpack.c.b16 %v137, %v136
      %v151 = vpack.c.b16 %v139, %v138
      %v152 = vpack.c.b16 %v141, %v140
      %v153 = vpack.c.b16 %v143, %v142
      %v154 = vpack.c.b16 %v145, %v144
      %v155 = vpack.c.b16 %v147, %v146
      %164 = vmatprep.subr.bf16.mxu0 0
      %165 = vmatpush1.bf16.msra.mxu0 %v155
      %166 = vmatprep.subr.bf16.mxu0 0
      %167 = vmatpush1.bf16.msra.mxu0 %v154
      %168 = vmatprep.subr.bf16.mxu0 0
      %169 = vmatpush1.bf16.msra.mxu0 %v153
      %170 = vmatprep.subr.bf16.mxu0 0
      %171 = vmatpush1.bf16.msra.mxu0 %v152
      %172 = vmatprep.subr.bf16.mxu0 0
      %173 = vmatpush1.bf16.msra.mxu0 %v151
      %174 = vmatprep.subr.bf16.mxu0 0
      %175 = vmatpush1.bf16.msra.mxu0 %v150
      %176 = vmatprep.subr.bf16.mxu0 0
      %177 = vmatpush1.bf16.msra.mxu0 %v149
      %178 = vmatprep.subr.bf16.mxu0 0
      %179 = vmatpush1.bf16.msra.mxu0 %v148
      %180 = vmatprep.subr.bf16.mxu0 0
      %181 = vmatpush2.bf16.msra.mxu0 0
      %182 = vmatprep.subr.bf16.mxu0 0
      %183 = vmatpush2.bf16.msra.mxu0 0
      %184 = vmatprep.subr.bf16.mxu0 0
      %185 = vmatpush2.bf16.msra.mxu0 0
      %186 = vmatprep.subr.bf16.mxu0 0
      %187 = vmatpush2.bf16.msra.mxu0 0
      %188 = vmatprep.subr.bf16.mxu0 0
      %189 = vmatpush2.bf16.msra.mxu0 0
      %190 = vmatprep.subr.bf16.mxu0 0
      %191 = vmatpush2.bf16.msra.mxu0 0
      %192 = vmatprep.subr.bf16.mxu0 0
      %193 = vmatpush2.bf16.msra.mxu0 0
      %194 = vmatprep.subr.bf16.mxu0 0
      %195 = vmatpush2.bf16.msra.mxu0 0
      %196 = vmatprep.mubr.bf16.mxu0 0
      %197 = vmatmul.mubr.bf16.gmra.mxu0 %v100
      %v198 = vpop.f32.mrf.mxu0
      %v199 = vadd.f32 %v66, %v198
      %v200 = vpop.f32.mrf.mxu0
      %v201 = vpop.f32.mrf.mxu0
      %v202 = vadd.f32 %v66, %v201
      %v203 = vpop.f32.mrf.mxu0
      %204 = vmatprep.mubr.bf16.mxu0 0
      %205 = vmatmul.mubr.bf16.gmra.mxu0 %v101
      %v206 = vpop.f32.mrf.mxu0
      %v207 = vadd.f32 %v66, %v206
      %v208 = vpop.f32.mrf.mxu0
      %v209 = vpop.f32.mrf.mxu0
      %v210 = vadd.f32 %v66, %v209
      %v211 = vpop.f32.mrf.mxu0
      %212 = vmatprep.mubr.bf16.mxu0 0
      %213 = vmatmul.mubr.bf16.gmra.mxu0 %v102
      %v214 = vpop.f32.mrf.mxu0
      %v215 = vadd.f32 %v66, %v214
      %v216 = vpop.f32.mrf.mxu0
      %v217 = vpop.f32.mrf.mxu0
      %v218 = vadd.f32 %v66, %v217
      %v219 = vpop.f32.mrf.mxu0
      %220 = vmatprep.mubr.bf16.mxu0 0
      %221 = vmatmul.mubr.bf16.gmra.mxu0 %v103
      %v222 = vpop.f32.mrf.mxu0
      %v223 = vadd.f32 %v66, %v222
      %v224 = vpop.f32.mrf.mxu0
      %v225 = vpop.f32.mrf.mxu0
      %v226 = vadd.f32 %v66, %v225
      %v227 = vpop.f32.mrf.mxu0
      %228 = vmatprep.mubr.bf16.mxu0 0
      %229 = vmatmul.mubr.bf16.gmra.mxu0 %v104
      %v230 = vpop.f32.mrf.mxu0
      %v231 = vadd.f32 %v66, %v230
      %v232 = vpop.f32.mrf.mxu0
      %v233 = vpop.f32.mrf.mxu0
      %v234 = vadd.f32 %v66, %v233
      %v235 = vpop.f32.mrf.mxu0
      %236 = vmatprep.mubr.bf16.mxu0 0
      %237 = vmatmul.mubr.bf16.gmra.mxu0 %v105
      %v238 = vpop.f32.mrf.mxu0
      %v239 = vadd.f32 %v66, %v238
      %v240 = vpop.f32.mrf.mxu0
      %v241 = vpop.f32.mrf.mxu0
      %v242 = vadd.f32 %v66, %v241
      %v243 = vpop.f32.mrf.mxu0
      %244 = vmatprep.mubr.bf16.mxu0 0
      %245 = vmatmul.mubr.bf16.gmra.mxu0 %v106
      %v246 = vpop.f32.mrf.mxu0
      %v247 = vadd.f32 %v66, %v246
      %v248 = vpop.f32.mrf.mxu0
      %v249 = vpop.f32.mrf.mxu0
      %v250 = vadd.f32 %v66, %v249
      %v251 = vpop.f32.mrf.mxu0
      %252 = vmatprep.mubr.bf16.mxu0 0
      %253 = vmatmul.mubr.bf16.gmra.mxu0 %v107
      %v254 = vpop.f32.mrf.mxu0
      %v255 = vadd.f32 %v66, %v254
      %v256 = vpop.f32.mrf.mxu0
      %v257 = vpop.f32.mrf.mxu0
      %v258 = vadd.f32 %v66, %v257
      %v259 = vpop.f32.mrf.mxu0
      %260 = vdwg.mxu0
      %v261 = vld [vmem:[%s5] sm:$0x1]
      %v263 = vlaneseq
      %v264 = vshrl.u32 %v263, 7
      %v265 = vsub.s32 0, %v264
      %v266 = vrot.slane %v261, %v265
      %v268 = vadd.f32 %v199, %v266
      %v269 = vadd.f32 %v202, %v266
      %v270 = vadd.f32 %v207, %v266
      %v271 = vadd.f32 %v210, %v266
      %v272 = vadd.f32 %v215, %v266
      %v273 = vadd.f32 %v218, %v266
      %v274 = vadd.f32 %v223, %v266
      %v275 = vadd.f32 %v226, %v266
      %v276 = vadd.f32 %v231, %v266
      %v277 = vadd.f32 %v234, %v266
      %v278 = vadd.f32 %v239, %v266
      %v279 = vadd.f32 %v242, %v266
      %v280 = vadd.f32 %v247, %v266
      %v281 = vadd.f32 %v250, %v266
      %v282 = vadd.f32 %v255, %v266
      %v283 = vadd.f32 %v258, %v266
      %284 = vst [vmem:[#allocation2] sm:$0xff] %v268
      %285 = vst [vmem:[#allocation2 + $0x8] sm:$0xff] %v269
      %286 = vst [vmem:[#allocation2 + $0x10] sm:$0xff] %v270
      %287 = vst [vmem:[#allocation2 + $0x18] sm:$0xff] %v271
      %288 = vst [vmem:[#allocation2 + $0x20] sm:$0xff] %v272
      %289 = vst [vmem:[#allocation2 + $0x28] sm:$0xff] %v273
      %290 = vst [vmem:[#allocation2 + $0x30] sm:$0xff] %v274
      %291 = vst [vmem:[#allocation2 + $0x38] sm:$0xff] %v275
      %292 = vst [vmem:[#allocation2 + $0x40] sm:$0xff] %v276
      %293 = vst [vmem:[#allocation2 + $0x48] sm:$0xff] %v277
      %294 = vst [vmem:[#allocation2 + $0x50] sm:$0xff] %v278
      %295 = vst [vmem:[#allocation2 + $0x58] sm:$0xff] %v279
      %296 = vst [vmem:[#allocation2 + $0x60] sm:$0xff] %v280
      %297 = vst [vmem:[#allocation2 + $0x68] sm:$0xff] %v281
      %298 = vst [vmem:[#allocation2 + $0x70] sm:$0xff] %v282
      %299 = vst [vmem:[#allocation2 + $0x78] sm:$0xff] %v283
    $region29: #{basic_block_forward.3} parent=1 // pred_fallthru
      _
    %v300 = vld [vmem:[#allocation2] sm:$0xff]
    %v301 = vld [vmem:[#allocation2 + $0x8] sm:$0xff]
    %v302 = vld [vmem:[#allocation2 + $0x10] sm:$0xff]
    %v303 = vld [vmem:[#allocation2 + $0x18] sm:$0xff]
    %v304 = vld [vmem:[#allocation2 + $0x20] sm:$0xff]
    %v305 = vld [vmem:[#allocation2 + $0x28] sm:$0xff]
    %v306 = vld [vmem:[#allocation2 + $0x30] sm:$0xff]
    %v307 = vld [vmem:[#allocation2 + $0x38] sm:$0xff]
    %v308 = vld [vmem:[#allocation2 + $0x40] sm:$0xff]
    %v309 = vld [vmem:[#allocation2 + $0x48] sm:$0xff]
    %v310 = vld [vmem:[#allocation2 + $0x50] sm:$0xff]
    %v311 = vld [vmem:[#allocation2 + $0x58] sm:$0xff]
    %v312 = vld [vmem:[#allocation2 + $0x60] sm:$0xff]
    %v313 = vld [vmem:[#allocation2 + $0x68] sm:$0xff]
    %v314 = vld [vmem:[#allocation2 + $0x70] sm:$0xff]
    %v315 = vld [vmem:[#allocation2 + $0x78] sm:$0xff]
    %v316 = vld [vmem:[%s0] sm:$0xff]
    %v317 = vld [vmem:[%s0 + $0x8] sm:$0xff]
    %v318 = vld [vmem:[%s0 + $0x10] sm:$0xff]
    %v319 = vld [vmem:[%s0 + $0x18] sm:$0xff]
    %v320 = vld [vmem:[%s0 + $0x20] sm:$0xff]
    %v321 = vld [vmem:[%s0 + $0x28] sm:$0xff]
    %v322 = vld [vmem:[%s0 + $0x30] sm:$0xff]
    %v323 = vld [vmem:[%s0 + $0x38] sm:$0xff]
    %v324 = vld [vmem:[%s0 + $0x40] sm:$0xff]
    %v325 = vld [vmem:[%s0 + $0x48] sm:$0xff]
    %v326 = vld [vmem:[%s0 + $0x50] sm:$0xff]
    %v327 = vld [vmem:[%s0 + $0x58] sm:$0xff]
    %v328 = vld [vmem:[%s0 + $0x60] sm:$0xff]
    %v329 = vld [vmem:[%s0 + $0x68] sm:$0xff]
    %v330 = vld [vmem:[%s0 + $0x70] sm:$0xff]
    %v331 = vld [vmem:[%s0 + $0x78] sm:$0xff]
    %v332 = vld [vmem:[%s1] sm:$0xf]
    %v333 = vld [vmem:[%s1 + $0x4] sm:$0xf]
    %v334 = vld [vmem:[%s1 + $0x8] sm:$0xf]
    %v335 = vld [vmem:[%s1 + $0xc] sm:$0xf]
    %v336 = vld [vmem:[%s1 + $0x10] sm:$0xf]
    %v337 = vld [vmem:[%s1 + $0x14] sm:$0xf]
    %v338 = vld [vmem:[%s1 + $0x18] sm:$0xf]
    %v339 = vld [vmem:[%s1 + $0x1c] sm:$0xf]
    %v340 = vld [vmem:[%s1 + $0x20] sm:$0xf]
    %v341 = vld [vmem:[%s1 + $0x24] sm:$0xf]
    %v342 = vld [vmem:[%s1 + $0x28] sm:$0xf]
    %v343 = vld [vmem:[%s1 + $0x2c] sm:$0xf]
    %v344 = vld [vmem:[%s1 + $0x30] sm:$0xf]
    %v345 = vld [vmem:[%s1 + $0x34] sm:$0xf]
    %v346 = vld [vmem:[%s1 + $0x38] sm:$0xf]
    %v347 = vld [vmem:[%s1 + $0x3c] sm:$0xf]
    %v348 = vld [vmem:[%s1 + $0x40] sm:$0xf]
    %v349 = vld [vmem:[%s1 + $0x44] sm:$0xf]
    %v350 = vld [vmem:[%s1 + $0x48] sm:$0xf]
    %v351 = vld [vmem:[%s1 + $0x4c] sm:$0xf]
    %v352 = vld [vmem:[%s1 + $0x50] sm:$0xf]
    %v353 = vld [vmem:[%s1 + $0x54] sm:$0xf]
    %v354 = vld [vmem:[%s1 + $0x58] sm:$0xf]
    %v355 = vld [vmem:[%s1 + $0x5c] sm:$0xf]
    %v356 = vld [vmem:[%s1 + $0x60] sm:$0xf]
    %v357 = vld [vmem:[%s1 + $0x64] sm:$0xf]
    %v358 = vld [vmem:[%s1 + $0x68] sm:$0xf]
    %v359 = vld [vmem:[%s1 + $0x6c] sm:$0xf]
    %v360 = vld [vmem:[%s1 + $0x70] sm:$0xf]
    %v361 = vld [vmem:[%s1 + $0x74] sm:$0xf]
    %v362 = vld [vmem:[%s1 + $0x78] sm:$0xf]
    %v363 = vld [vmem:[%s1 + $0x7c] sm:$0xf]
    %v380 = vunpack.c.l.b16 %v316
    %v381 = vunpack.c.h.b16 %v316
    %v382 = vunpack.c.l.b16 %v317
    %v383 = vunpack.c.h.b16 %v317
    %v384 = vunpack.c.l.b16 %v318
    %v385 = vunpack.c.h.b16 %v318
    %v386 = vunpack.c.l.b16 %v319
    %v387 = vunpack.c.h.b16 %v319
    %v388 = vunpack.c.l.b16 %v320
    %v389 = vunpack.c.h.b16 %v320
    %v390 = vunpack.c.l.b16 %v321
    %v391 = vunpack.c.h.b16 %v321
    %v392 = vunpack.c.l.b16 %v322
    %v393 = vunpack.c.h.b16 %v322
    %v394 = vunpack.c.l.b16 %v323
    %v395 = vunpack.c.h.b16 %v323
    %v396 = vunpack.c.l.b16 %v324
    %v397 = vunpack.c.h.b16 %v324
    %v398 = vunpack.c.l.b16 %v325
    %v399 = vunpack.c.h.b16 %v325
    %v400 = vunpack.c.l.b16 %v326
    %v401 = vunpack.c.h.b16 %v326
    %v402 = vunpack.c.l.b16 %v327
    %v403 = vunpack.c.h.b16 %v327
    %v404 = vunpack.c.l.b16 %v328
    %v405 = vunpack.c.h.b16 %v328
    %v406 = vunpack.c.l.b16 %v329
    %v407 = vunpack.c.h.b16 %v329
    %v408 = vunpack.c.l.b16 %v330
    %v409 = vunpack.c.h.b16 %v330
    %v410 = vunpack.c.l.b16 %v331
    %v411 = vunpack.c.h.b16 %v331
    %v412 = vpack.c.b16 %v382, %v380
    %v413 = vpack.c.b16 %v383, %v381
    %v414 = vpack.c.b16 %v386, %v384
    %v415 = vpack.c.b16 %v387, %v385
    %v416 = vpack.c.b16 %v390, %v388
    %v417 = vpack.c.b16 %v391, %v389
    %v418 = vpack.c.b16 %v394, %v392
    %v419 = vpack.c.b16 %v395, %v393
    %v420 = vpack.c.b16 %v398, %v396
    %v421 = vpack.c.b16 %v399, %v397
    %v422 = vpack.c.b16 %v402, %v400
    %v423 = vpack.c.b16 %v403, %v401
    %v424 = vpack.c.b16 %v406, %v404
    %v425 = vpack.c.b16 %v407, %v405
    %v426 = vpack.c.b16 %v410, %v408
    %v427 = vpack.c.b16 %v411, %v409
    %v476 = vunpack.c.l.b16 %v332
    %v477 = vunpack.c.l.b16 %v333
    %v478 = vunpack.c.l.b16 %v334
    %v479 = vunpack.c.l.b16 %v335
    %v480 = vunpack.c.l.b16 %v336
    %v481 = vunpack.c.l.b16 %v337
    %v482 = vunpack.c.l.b16 %v338
    %v483 = vunpack.c.l.b16 %v339
    %v484 = vunpack.c.l.b16 %v340
    %v485 = vunpack.c.l.b16 %v341
    %v486 = vunpack.c.l.b16 %v342
    %v487 = vunpack.c.l.b16 %v343
    %v488 = vunpack.c.l.b16 %v344
    %v489 = vunpack.c.l.b16 %v345
    %v490 = vunpack.c.l.b16 %v346
    %v491 = vunpack.c.l.b16 %v347
    %v492 = vunpack.c.l.b16 %v348
    %v493 = vunpack.c.l.b16 %v349
    %v494 = vunpack.c.l.b16 %v350
    %v495 = vunpack.c.l.b16 %v351
    %v496 = vunpack.c.l.b16 %v352
    %v497 = vunpack.c.l.b16 %v353
    %v498 = vunpack.c.l.b16 %v354
    %v499 = vunpack.c.l.b16 %v355
    %v500 = vunpack.c.l.b16 %v356
    %v501 = vunpack.c.l.b16 %v357
    %v502 = vunpack.c.l.b16 %v358
    %v503 = vunpack.c.l.b16 %v359
    %v504 = vunpack.c.l.b16 %v360
    %v505 = vunpack.c.l.b16 %v361
    %v506 = vunpack.c.l.b16 %v362
    %v507 = vunpack.c.l.b16 %v363
    %v508 = vpack.c.b16 %v477, %v476
    %v509 = vpack.c.b16 %v479, %v478
    %v510 = vpack.c.b16 %v481, %v480
    %v511 = vpack.c.b16 %v483, %v482
    %v512 = vpack.c.b16 %v485, %v484
    %v513 = vpack.c.b16 %v487, %v486
    %v514 = vpack.c.b16 %v489, %v488
    %v515 = vpack.c.b16 %v491, %v490
    %v516 = vpack.c.b16 %v493, %v492
    %v517 = vpack.c.b16 %v495, %v494
    %v518 = vpack.c.b16 %v497, %v496
    %v519 = vpack.c.b16 %v499, %v498
    %v520 = vpack.c.b16 %v501, %v500
    %v521 = vpack.c.b16 %v503, %v502
    %v522 = vpack.c.b16 %v505, %v504
    %v523 = vpack.c.b16 %v507, %v506
    %540 = vmatprep.subr.bf16.mxu0 0
    %541 = vmatpush1.bf16.msra.mxu0 %v515
    %542 = vmatprep.subr.bf16.mxu0 0
    %543 = vmatpush1.bf16.msra.mxu0 %v514
    %544 = vmatprep.subr.bf16.mxu0 0
    %545 = vmatpush1.bf16.msra.mxu0 %v513
    %546 = vmatprep.subr.bf16.mxu0 0
    %547 = vmatpush1.bf16.msra.mxu0 %v512
    %548 = vmatprep.subr.bf16.mxu0 0
    %549 = vmatpush1.bf16.msra.mxu0 %v511
    %550 = vmatprep.subr.bf16.mxu0 0
    %551 = vmatpush1.bf16.msra.mxu0 %v510
    %552 = vmatprep.subr.bf16.mxu0 0
    %553 = vmatpush1.bf16.msra.mxu0 %v509
    %554 = vmatprep.subr.bf16.mxu0 0
    %555 = vmatpush1.bf16.msra.mxu0 %v508
    %556 = vmatprep.subr.bf16.mxu0 0
    %557 = vmatpush2.bf16.msra.mxu0 %v523
    %558 = vmatprep.subr.bf16.mxu0 0
    %559 = vmatpush2.bf16.msra.mxu0 %v522
    %560 = vmatprep.subr.bf16.mxu0 0
    %561 = vmatpush2.bf16.msra.mxu0 %v521
    %562 = vmatprep.subr.bf16.mxu0 0
    %563 = vmatpush2.bf16.msra.mxu0 %v520
    %564 = vmatprep.subr.bf16.mxu0 0
    %565 = vmatpush2.bf16.msra.mxu0 %v519
    %566 = vmatprep.subr.bf16.mxu0 0
    %567 = vmatpush2.bf16.msra.mxu0 %v518
    %568 = vmatprep.subr.bf16.mxu0 0
    %569 = vmatpush2.bf16.msra.mxu0 %v517
    %570 = vmatprep.subr.bf16.mxu0 0
    %571 = vmatpush2.bf16.msra.mxu0 %v516
    %572 = vmatprep.mubr.bf16.mxu0 %v413
    %573 = vmatmul.mubr.bf16.gmra.mxu0 %v412
    %v574 = vpop.f32.mrf.mxu0
    %v575 = vadd.f32 0.0, %v574
    %v576 = vpop.f32.mrf.mxu0
    %v577 = vpop.f32.mrf.mxu0
    %v578 = vadd.f32 0.0, %v577
    %v579 = vpop.f32.mrf.mxu0
    %580 = vmatprep.mubr.bf16.mxu0 %v415
    %581 = vmatmul.mubr.bf16.gmra.mxu0 %v414
    %v582 = vpop.f32.mrf.mxu0
    %v583 = vadd.f32 0.0, %v582
    %v584 = vpop.f32.mrf.mxu0
    %v585 = vpop.f32.mrf.mxu0
    %v586 = vadd.f32 0.0, %v585
    %v587 = vpop.f32.mrf.mxu0
    %588 = vmatprep.mubr.bf16.mxu0 %v417
    %589 = vmatmul.mubr.bf16.gmra.mxu0 %v416
    %v590 = vpop.f32.mrf.mxu0
    %v591 = vadd.f32 0.0, %v590
    %v592 = vpop.f32.mrf.mxu0
    %v593 = vpop.f32.mrf.mxu0
    %v594 = vadd.f32 0.0, %v593
    %v595 = vpop.f32.mrf.mxu0
    %596 = vmatprep.mubr.bf16.mxu0 %v419
    %597 = vmatmul.mubr.bf16.gmra.mxu0 %v418
    %v598 = vpop.f32.mrf.mxu0
    %v599 = vadd.f32 0.0, %v598
    %v600 = vpop.f32.mrf.mxu0
    %v601 = vpop.f32.mrf.mxu0
    %v602 = vadd.f32 0.0, %v601
    %v603 = vpop.f32.mrf.mxu0
    %604 = vmatprep.mubr.bf16.mxu0 %v421
    %605 = vmatmul.mubr.bf16.gmra.mxu0 %v420
    %v606 = vpop.f32.mrf.mxu0
    %v607 = vadd.f32 0.0, %v606
    %v608 = vpop.f32.mrf.mxu0
    %v609 = vpop.f32.mrf.mxu0
    %v610 = vadd.f32 0.0, %v609
    %v611 = vpop.f32.mrf.mxu0
    %612 = vmatprep.mubr.bf16.mxu0 %v423
    %613 = vmatmul.mubr.bf16.gmra.mxu0 %v422
    %v614 = vpop.f32.mrf.mxu0
    %v615 = vadd.f32 0.0, %v614
    %v616 = vpop.f32.mrf.mxu0
    %v617 = vpop.f32.mrf.mxu0
    %v618 = vadd.f32 0.0, %v617
    %v619 = vpop.f32.mrf.mxu0
    %620 = vmatprep.mubr.bf16.mxu0 %v425
    %621 = vmatmul.mubr.bf16.gmra.mxu0 %v424
    %v622 = vpop.f32.mrf.mxu0
    %v623 = vadd.f32 0.0, %v622
    %v624 = vpop.f32.mrf.mxu0
    %v625 = vpop.f32.mrf.mxu0
    %v626 = vadd.f32 0.0, %v625
    %v627 = vpop.f32.mrf.mxu0
    %628 = vmatprep.mubr.bf16.mxu0 %v427
    %629 = vmatmul.mubr.bf16.gmra.mxu0 %v426
    %v630 = vpop.f32.mrf.mxu0
    %v631 = vadd.f32 0.0, %v630
    %v632 = vpop.f32.mrf.mxu0
    %v633 = vpop.f32.mrf.mxu0
    %v634 = vadd.f32 0.0, %v633
    %v635 = vpop.f32.mrf.mxu0
    %636 = vdwg.mxu0
    %v637 = vadd.f32 %v300, %v575
    %v638 = vadd.f32 %v301, %v578
    %v639 = vadd.f32 %v302, %v583
    %v640 = vadd.f32 %v303, %v586
    %v641 = vadd.f32 %v304, %v591
    %v642 = vadd.f32 %v305, %v594
    %v643 = vadd.f32 %v306, %v599
    %v644 = vadd.f32 %v307, %v602
    %v645 = vadd.f32 %v308, %v607
    %v646 = vadd.f32 %v309, %v610
    %v647 = vadd.f32 %v310, %v615
    %v648 = vadd.f32 %v311, %v618
    %v649 = vadd.f32 %v312, %v623
    %v650 = vadd.f32 %v313, %v626
    %v651 = vadd.f32 %v314, %v631
    %v652 = vadd.f32 %v315, %v634
    %653 = vst [vmem:[#allocation2] sm:$0xff] %v637
    %654 = vst [vmem:[#allocation2 + $0x8] sm:$0xff] %v638
    %655 = vst [vmem:[#allocation2 + $0x10] sm:$0xff] %v639
    %656 = vst [vmem:[#allocation2 + $0x18] sm:$0xff] %v640
    %657 = vst [vmem:[#allocation2 + $0x20] sm:$0xff] %v641
    %658 = vst [vmem:[#allocation2 + $0x28] sm:$0xff] %v642
    %659 = vst [vmem:[#allocation2 + $0x30] sm:$0xff] %v643
    %660 = vst [vmem:[#allocation2 + $0x38] sm:$0xff] %v644
    %661 = vst [vmem:[#allocation2 + $0x40] sm:$0xff] %v645
    %662 = vst [vmem:[#allocation2 + $0x48] sm:$0xff] %v646
    %663 = vst [vmem:[#allocation2 + $0x50] sm:$0xff] %v647
    %664 = vst [vmem:[#allocation2 + $0x58] sm:$0xff] %v648
    %665 = vst [vmem:[#allocation2 + $0x60] sm:$0xff] %v649
    %666 = vst [vmem:[#allocation2 + $0x68] sm:$0xff] %v650
    %667 = vst [vmem:[#allocation2 + $0x70] sm:$0xff] %v651
    %668 = vst [vmem:[#allocation2 + $0x78] sm:$0xff] %v652
    // Predicated region
    $region30: #{basic_block_forward.3} parent=1 // pred_check
      %p669 = pneg %p25
    $region31: #{basic_block_forward.3} parent=1 // pred_check_branch
      %671 = sbr.rel (%p669) target = $region33
    $region32: #{basic_block_forward.3} parent=1 // pred_region
      %v672 = vld [vmem:[#allocation2] sm:$0xff]
      %v673 = vld [vmem:[#allocation2 + $0x8] sm:$0xff]
      %v674 = vld [vmem:[#allocation2 + $0x10] sm:$0xff]
      %v675 = vld [vmem:[#allocation2 + $0x18] sm:$0xff]
      %v676 = vld [vmem:[#allocation2 + $0x20] sm:$0xff]
      %v677 = vld [vmem:[#allocation2 + $0x28] sm:$0xff]
      %v678 = vld [vmem:[#allocation2 + $0x30] sm:$0xff]
      %v679 = vld [vmem:[#allocation2 + $0x38] sm:$0xff]
      %v680 = vld [vmem:[#allocation2 + $0x40] sm:$0xff]
      %v681 = vld [vmem:[#allocation2 + $0x48] sm:$0xff]
      %v682 = vld [vmem:[#allocation2 + $0x50] sm:$0xff]
      %v683 = vld [vmem:[#allocation2 + $0x58] sm:$0xff]
      %v684 = vld [vmem:[#allocation2 + $0x60] sm:$0xff]
      %v685 = vld [vmem:[#allocation2 + $0x68] sm:$0xff]
      %v686 = vld [vmem:[#allocation2 + $0x70] sm:$0xff]
      %v687 = vld [vmem:[#allocation2 + $0x78] sm:$0xff]
      %v688 = vmax.f32 %v672, 0.0
      %v689 = vmax.f32 %v673, 0.0
      %v690 = vmax.f32 %v674, 0.0
      %v691 = vmax.f32 %v675, 0.0
      %v692 = vmax.f32 %v676, 0.0
      %v693 = vmax.f32 %v677, 0.0
      %v694 = vmax.f32 %v678, 0.0
      %v695 = vmax.f32 %v679, 0.0
      %v696 = vmax.f32 %v680, 0.0
      %v697 = vmax.f32 %v681, 0.0
      %v698 = vmax.f32 %v682, 0.0
      %v699 = vmax.f32 %v683, 0.0
      %v700 = vmax.f32 %v684, 0.0
      %v701 = vmax.f32 %v685, 0.0
      %v702 = vmax.f32 %v686, 0.0
      %v703 = vmax.f32 %v687, 0.0
      %704 = vst [vmem:[#allocation3] sm:$0xff] %v688
      %705 = vst [vmem:[#allocation3 + $0x8] sm:$0xff] %v689
      %706 = vst [vmem:[#allocation3 + $0x10] sm:$0xff] %v690
      %707 = vst [vmem:[#allocation3 + $0x18] sm:$0xff] %v691
      %708 = vst [vmem:[#allocation3 + $0x20] sm:$0xff] %v692
      %709 = vst [vmem:[#allocation3 + $0x28] sm:$0xff] %v693
      %710 = vst [vmem:[#allocation3 + $0x30] sm:$0xff] %v694
      %711 = vst [vmem:[#allocation3 + $0x38] sm:$0xff] %v695
      %712 = vst [vmem:[#allocation3 + $0x40] sm:$0xff] %v696
      %713 = vst [vmem:[#allocation3 + $0x48] sm:$0xff] %v697
      %714 = vst [vmem:[#allocation3 + $0x50] sm:$0xff] %v698
      %715 = vst [vmem:[#allocation3 + $0x58] sm:$0xff] %v699
      %716 = vst [vmem:[#allocation3 + $0x60] sm:$0xff] %v700
      %717 = vst [vmem:[#allocation3 + $0x68] sm:$0xff] %v701
      %718 = vst [vmem:[#allocation3 + $0x70] sm:$0xff] %v702
      %719 = vst [vmem:[#allocation3 + $0x78] sm:$0xff] %v703
    $region33: #{basic_block_forward.3} parent=1 // pred_fallthru
      _
    // Predicated region
    $region34: #{basic_block_forward.3} parent=1 // pred_check
      _
    $region35: #{basic_block_forward.3} parent=1 // pred_check_branch
      %721 = sbr.rel (0) target = $region37
    $region36: #{basic_block_forward.3} parent=1 // pred_region
      %s723 = ssub.s32 2048, 2048
      %724 = vsyncadd [#allocation4], %s723
      %s725 = sshll.u32 [#allocation3], 4
      %s726 = int_to_ptr.vmem [resolvable:$true] %s725
      %731 = dma.vmem_to_hbm [thread:$0]  %s726, 2048, %s6, [#allocation4], 128, 128, 8
    $region37: #{basic_block_forward.3} parent=1 // pred_fallthru
      _
    // Predicated region
    $region38: #{basic_block_forward.3} parent=1 // pred_check
      _
    $region39: #{basic_block_forward.3} parent=1 // pred_check_branch
      %733 = sbr.rel (0) target = $region41
    $region40: #{basic_block_forward.3} parent=1 // pred_region
      %734 = dma.done [#allocation4], 2048
    $region41: #{basic_block_forward.3} parent=1 // pred_fallthru
      _
    %735 = vsyncpa [#allocation4], 1

</llo_original>
